<compile_context>
chip_gen: v5e
topology: v5e:2x2
jax: 0.10.0
libtpu: 0.0.40
codegen_flags: <defaults>
</compile_context>

<pallas_src>
import functools

import jax
import jax.numpy as jnp
import numpy as np
from jax.experimental import pallas as pl
from jax.experimental.pallas import tpu as pltpu

EPS = 1e-5  # PyTorch BatchNorm2d default eps


# --------------------------- Pallas kernels --------------------------------- #

def _time_mix_kernel(stats_ref, x_ref, wt_ref, bt_ref, o_ref, ps_ref):
    """One batch element per grid step.

    stats_ref : SMEM (2,)        f32   [mu, 1/sqrt(var+eps)] over the whole input
    x_ref     : VMEM (1, T, F)   f32
    wt_ref    : VMEM (T, T)      mm_dtype (resident: constant index_map)
    bt_ref    : VMEM (T, 1)      f32    (resident)
    o_ref     : VMEM (1, T, F)   f32    stage-1 output (residual included)
    ps_ref    : VMEM (1, 2, 128) f32    partial [sum, sumsq] of (out1 - mu)
                                        -> feeds the stage-2 BatchNorm stats
    """
    mu = stats_ref[0]
    inv_std = stats_ref[1]
    x = x_ref[0]                                   # (T, F) f32
    bn = (x - mu) * inv_std                        # global BatchNorm2d(1)
    # Time-mixing Linear: y[u, f] = sum_t wt[u, t] * bn[t, f] + bt[u]
    t = jnp.dot(wt_ref[...], bn.astype(wt_ref.dtype),
                preferred_element_type=jnp.float32)          # MXU, (T, F)
    y = jnp.maximum(t + bt_ref[...], 0.0) + x      # ReLU (dropout = id) + residual
    o_ref[0] = y
    # Fused partial statistics for the stage-2 BN (shifted by mu for numerical
    # conditioning).  Saves a full extra HBM read of out1 by XLA.
    d = y - mu
    row = jax.lax.broadcasted_iota(jnp.int32, (1, 2, 128), 1)
    ps_ref[...] = jnp.where(row == 0, jnp.sum(d), jnp.sum(d * d))


def _feat_mix_kernel(stats_ref, x_ref, w1_ref, b1_ref, w2_ref, b2_ref, o_ref):
    """A (row_tile, F) slab of rows per grid step (rows = B*T).

    stats_ref : SMEM (2,)     f32   [mu, 1/sqrt(var+eps)] over the stage-1 output
    x_ref     : VMEM (Rt, F)  f32
    w1_ref    : VMEM (F, H)   mm_dtype (resident)
    b1_ref    : VMEM (1, H)   f32
    w2_ref    : VMEM (H, F)   mm_dtype (resident)
    b2_ref    : VMEM (1, F)   f32
    o_ref     : VMEM (Rt, F)  f32
    """
    mu = stats_ref[0]
    inv_std = stats_ref[1]
    x = x_ref[...]
    bn = (x - mu) * inv_std
    h = jnp.dot(bn.astype(w1_ref.dtype), w1_ref[...],
                preferred_element_type=jnp.float32)          # (Rt, H)
    h = jnp.maximum(h + b1_ref[...], 0.0)                    # ReLU (dropout = id)
    y = jnp.dot(h.astype(w2_ref.dtype), w2_ref[...],
                preferred_element_type=jnp.float32)          # (Rt, F)
    o_ref[...] = y + b2_ref[...] + x                         # bias + residual


# ------------------------------ wrapper -------------------------------------- #

def mixer_forward(x, params, *, mm_dtype=jnp.bfloat16, row_tile=512):
    """x: (B, T, F) float32 with T = in_dim (time) and F = feature_dim."""
    B, T, F = x.shape
    H = params["b1"].shape[0]
    wbytes = jnp.dtype(mm_dtype).itemsize

    x = x.astype(jnp.float32)

    # Weights laid out row-major for the in-kernel matmuls; MXU operands in mm_dtype.
    wt = params["wt"].astype(mm_dtype)                               # (T, T)
    bt = params["bt"].reshape(T, 1).astype(jnp.float32)              # (T, 1)
    w1 = params["w1"].T.astype(mm_dtype)                             # (F, H)
    b1 = params["b1"].astype(jnp.float32).reshape(1, H)
    w2 = params["w2"].T.astype(mm_dtype)                             # (H, F)
    b2 = params["b2"].astype(jnp.float32).reshape(1, F)

    cp = pltpu.CompilerParams(dimension_semantics=("parallel",),
                              vmem_limit_bytes=32 * 1024 * 1024)

    # ---------------- stage 1: time mixing ----------------
    # Global BN statistics of the input: single fused XLA pass (sum + sumsq).
    n = B * T * F
    s1 = jnp.sum(x)
    q1 = jnp.sum(x * x)
    mu1 = s1 / n
    var1 = jnp.maximum(q1 / n - mu1 * mu1, 0.0)
    stats1 = jnp.stack([mu1, jax.lax.rsqrt(var1 + EPS)]).astype(jnp.float32)

    cost1 = pl.CostEstimate(
        flops=2 * B * T * T * F, transcendentals=0,
        bytes_accessed=2 * B * T * F * 4 + T * T * wbytes + T * 4
                       + B * 2 * 128 * 4 + 8)

    out1, part = pl.pallas_call(
        _time_mix_kernel,
        out_shape=(jax.ShapeDtypeStruct((B, T, F), jnp.float32),
                   jax.ShapeDtypeStruct((B, 2, 128), jnp.float32)),
        grid=(B,),
        in_specs=[
            pl.BlockSpec(memory_space=pltpu.MemorySpace.SMEM),        # stats1
            pl.BlockSpec((1, T, F), lambda b: (b, 0, 0)),             # x tile
            pl.BlockSpec((T, T), lambda b: (0, 0)),                   # wt (resident)
            pl.BlockSpec((T, 1), lambda b: (0, 0)),                   # bt (resident)
        ],
        out_specs=(pl.BlockSpec((1, T, F), lambda b: (b, 0, 0)),      # out1
                   pl.BlockSpec((1, 2, 128), lambda b: (b, 0, 0))),   # partial stats
        compiler_params=cp,
        cost_estimate=cost1,
    )(stats1, x, wt, bt)

    # ---------------- stage 2: feature mixing ----------------
    # Stage-2 BN needs GLOBAL stats of out1 (true data dependency -> separate
    # pallas_call).  Reduce the tiny fused per-batch partials (shift-invariant
    # variance: var(y) = E[(y-mu1)^2] - (E[y-mu1])^2).
    dsum = jnp.sum(part[:, 0, 0])
    dsq = jnp.sum(part[:, 1, 0])
    dmean = dsum / n
    mu2 = mu1 + dmean
    var2 = jnp.maximum(dsq / n - dmean * dmean, 0.0)
    stats2 = jnp.stack([mu2, jax.lax.rsqrt(var2 + EPS)]).astype(jnp.float32)

    rows = B * T
    x2 = out1.reshape(rows, F)                    # contiguous reshape, no copy glue
    rt = rows if rows <= row_tile else row_tile   # row_tile is a multiple of 8

    cost2 = pl.CostEstimate(
        flops=4 * rows * F * H, transcendentals=0,
        bytes_accessed=2 * rows * F * 4 + 2 * F * H * wbytes + (H + F) * 4 + 8)

    out2 = pl.pallas_call(
        _feat_mix_kernel,
        out_shape=jax.ShapeDtypeStruct((rows, F), jnp.float32),
        grid=(pl.cdiv(rows, rt),),
        in_specs=[
            pl.BlockSpec(memory_space=pltpu.MemorySpace.SMEM),        # stats2
            pl.BlockSpec((rt, F), lambda r: (r, 0)),                  # out1 rows
            pl.BlockSpec((F, H), lambda r: (0, 0)),                   # w1 (resident)
            pl.BlockSpec((1, H), lambda r: (0, 0)),                   # b1
            pl.BlockSpec((H, F), lambda r: (0, 0)),                   # w2 (resident)
            pl.BlockSpec((1, F), lambda r: (0, 0)),                   # b2
        ],
        out_specs=pl.BlockSpec((rt, F), lambda r: (r, 0)),
        compiler_params=cp,
        cost_estimate=cost2,
    )(stats2, x2, w1, b1, w2, b2)

    return out2.reshape(B, T, F)


# ----------------------- pure-JAX reference (for checking) ------------------- #

def mixer_reference(x, params):
    wt, bt, w1, b1, w2, b2 = (params[k] for k in ("wt", "bt", "w1", "b1", "w2", "b2"))
    hi = jax.lax.Precision.HIGHEST

    def bn(z):
        mu = jnp.mean(z)
        var = jnp.mean(jnp.square(z - mu))
        return (z - mu) / jnp.sqrt(var + EPS)

    o = bn(x)
    o = jnp.einsum("ut,btf->buf", wt, o, precision=hi) + bt[None, :, None]
    out1 = jax.nn.relu(o) + x
    o = bn(out1)
    o = jax.nn.relu(jnp.einsum("btf,hf->bth", o, w1, precision=hi) + b1[None, None, :])
    o = jnp.einsum("bth,fh->btf", o, w2, precision=hi) + b2[None, None, :]
    return o + out1


# --------------------------------- main -------------------------------------- #

if __name__ == "__main__":
    B, T, F, H = 2, 8, 16, 32   # batch, in_dim (time), feature_dim, hidden_dim

    key = jax.random.PRNGKey(0)
    kx, k1, k2, k3, k4, k5, k6 = jax.random.split(key, 7)
    x = jax.random.normal(kx, (B, T, F), jnp.float32)
    params = {
        "wt": jax.random.normal(k1, (T, T), jnp.float32) * (1.0 / jnp.sqrt(T)),
        "bt": jax.random.normal(k2, (T,), jnp.float32) * 0.1,
        "w1": jax.random.normal(k3, (H, F), jnp.float32) * (1.0 / jnp.sqrt(F)),
        "b1": jax.random.normal(k4, (H,), jnp.float32) * 0.1,
        "w2": jax.random.normal(k5, (F, H), jnp.float32) * (1.0 / jnp.sqrt(H)),
        "b2": jax.random.normal(k6, (F,), jnp.float32) * 0.1,
    }

    ref = mixer_reference(x, params)

    # 1) exact-semantics check: f32 MXU operands, tight tolerance
    fwd_f32 = jax.jit(functools.partial(mixer_forward, mm_dtype=jnp.float32))
    out_f32 = jax.block_until_ready(fwd_f32(x, params))
    assert out_f32.shape == (B, T, F)
    np.testing.assert_allclose(np.asarray(out_f32), np.asarray(ref),
                               rtol=1e-4, atol=1e-4)

    # 2) performance path: bf16 MXU operands / f32 accumulate
    fwd_bf16 = jax.jit(functools.partial(mixer_forward, mm_dtype=jnp.bfloat16))
    out_bf16 = jax.block_until_ready(fwd_bf16(x, params))
    np.testing.assert_allclose(np.asarray(out_bf16), np.asarray(ref),
                               rtol=1e-1, atol=1e-1)

    print("KERNEL_OK")
</pallas_src>

<mosaic_0001>
module attributes {stable_mosaic.version = 11 : i64} {
  func.func @_time_mix_kernel(%arg0: i32, %arg1: memref<2xf32, #tpu.memory_space<smem>>, %arg2: memref<1x8x16xf32, #tpu.memory_space<vmem>>, %arg3: memref<8x8xf32, #tpu.memory_space<vmem>>, %arg4: memref<8x1xf32, #tpu.memory_space<vmem>>, %arg5: memref<1x8x16xf32, #tpu.memory_space<vmem>>, %arg6: memref<1x2x128xf32, #tpu.memory_space<vmem>>) attributes {dimension_semantics = [#tpu.dimension_semantics<parallel>], iteration_bounds = array<i64: 2>, scalar_prefetch = 0 : i64, scratch_operands = 0 : i64, tpu.core_type = #tpu.core_type<tc>, window_params = [{transform_indices = @transform_0, window_bounds = array<i64: 2>}, {transform_indices = @transform_1, window_bounds = array<i64: 1, 8, 16>}, {pipeline_mode = #tpu.pipeline_mode<synchronous>, transform_indices = @transform_2, window_bounds = array<i64: 8, 8>}, {pipeline_mode = #tpu.pipeline_mode<synchronous>, transform_indices = @transform_3, window_bounds = array<i64: 8, 1>}, {transform_indices = @transform_4, window_bounds = array<i64: 1, 8, 16>}, {transform_indices = @transform_5, window_bounds = array<i64: 1, 2, 128>}]} {
    %c0 = arith.constant 0 : index
    %0 = memref.load %arg1[%c0] : memref<2xf32, #tpu.memory_space<smem>>
    %c1 = arith.constant 1 : index
    %1 = memref.load %arg1[%c1] : memref<2xf32, #tpu.memory_space<smem>>
    %c0_0 = arith.constant 0 : index
    %c0_1 = arith.constant 0 : index
    %c0_2 = arith.constant 0 : index
    %2 = vector.load %arg2[%c0_0, %c0_1, %c0_2] : memref<1x8x16xf32, #tpu.memory_space<vmem>>, vector<1x8x16xf32>
    %3 = vector.shape_cast %2 : vector<1x8x16xf32> to vector<8x16xf32>
    %4 = vector.broadcast %0 : f32 to vector<8x16xf32>
    %5 = arith.subf %3, %4 : vector<8x16xf32>
    %6 = vector.broadcast %1 : f32 to vector<8x16xf32>
    %7 = arith.mulf %5, %6 : vector<8x16xf32>
    %c0_3 = arith.constant 0 : index
    %c0_4 = arith.constant 0 : index
    %8 = vector.load %arg3[%c0_3, %c0_4] : memref<8x8xf32, #tpu.memory_space<vmem>>, vector<8x8xf32>
    %cst = arith.constant dense<0.000000e+00> : vector<8x16xf32>
    %9 = tpu.matmul %8, %7, %cst {dimension_numbers = #tpu.dot_dimension_numbers<[1], [0], [0], [1], [0, 0, 1, 1], [], []>} : vector<8x8xf32>, vector<8x16xf32>, vector<8x16xf32> -> vector<8x16xf32>
    %c0_5 = arith.constant 0 : index
    %c0_6 = arith.constant 0 : index
    %10 = vector.load %arg4[%c0_5, %c0_6] : memref<8x1xf32, #tpu.memory_space<vmem>>, vector<8x1xf32>
    %11 = vector.broadcast %10 : vector<8x1xf32> to vector<8x16xf32>
    %12 = arith.addf %9, %11 : vector<8x16xf32>
    %cst_7 = arith.constant 0.000000e+00 : f32
    %13 = vector.broadcast %cst_7 : f32 to vector<8x16xf32>
    %14 = arith.maximumf %12, %13 : vector<8x16xf32>
    %15 = arith.addf %14, %3 : vector<8x16xf32>
    %c0_8 = arith.constant 0 : index
    %c0_9 = arith.constant 0 : index
    %c0_10 = arith.constant 0 : index
    %16 = vector.load %arg5[%c0_8, %c0_9, %c0_10] : memref<1x8x16xf32, #tpu.memory_space<vmem>>, vector<1x8x16xf32>
    %17 = vector.shape_cast %16 : vector<1x8x16xf32> to vector<8x16xf32>
    %18 = vector.shape_cast %15 : vector<8x16xf32> to vector<1x8x16xf32>
    tpu.vector_store %arg5[%c0_8, %c0_9, %c0_10], %18 {strides = array<i32>} : memref<1x8x16xf32, #tpu.memory_space<vmem>>, vector<1x8x16xf32>,
    %19 = vector.broadcast %0 : f32 to vector<8x16xf32>
    %20 = arith.subf %15, %19 : vector<8x16xf32>
    %21 = tpu.iota {dimensions = array<i32: 1>} : vector<1x2x128xi32>
    %c0_i32 = arith.constant 0 : i32
    %22 = vector.broadcast %c0_i32 : i32 to vector<1x2x128xi32>
    %23 = arith.cmpi eq, %21, %22 : vector<1x2x128xi32>
    %24 = vector.shape_cast %20 : vector<8x16xf32> to vector<1x8x16xf32>
    %cst_11 = arith.constant dense<0.000000e+00> : vector<1xf32>
    %25 = vector.multi_reduction <add>, %24, %cst_11 [1, 2] : vector<1x8x16xf32> to vector<1xf32>
    %26 = vector.shape_cast %25 : vector<1xf32> to vector<1x1x1xf32>
    %27 = vector.extract %26[0, 0, 0] : f32 from vector<1x1x1xf32>
    %28 = arith.mulf %20, %20 : vector<8x16xf32>
    %29 = vector.shape_cast %28 : vector<8x16xf32> to vector<1x8x16xf32>
    %cst_12 = arith.constant dense<0.000000e+00> : vector<1xf32>
    %30 = vector.multi_reduction <add>, %29, %cst_12 [1, 2] : vector<1x8x16xf32> to vector<1xf32>
    %31 = vector.shape_cast %30 : vector<1xf32> to vector<1x1x1xf32>
    %32 = vector.extract %31[0, 0, 0] : f32 from vector<1x1x1xf32>
    %33 = vector.broadcast %27 : f32 to vector<1x2x128xf32>
    %34 = vector.broadcast %32 : f32 to vector<1x2x128xf32>
    %35 = arith.select %23, %33, %34 : vector<1x2x128xi1>, vector<1x2x128xf32>
    %c0_13 = arith.constant 0 : index
    %c0_14 = arith.constant 0 : index
    %c0_15 = arith.constant 0 : index
    %36 = vector.load %arg6[%c0_13, %c0_14, %c0_15] : memref<1x2x128xf32, #tpu.memory_space<vmem>>, vector<1x2x128xf32>
    tpu.vector_store %arg6[%c0_13, %c0_14, %c0_15], %35 {strides = array<i32>} : memref<1x2x128xf32, #tpu.memory_space<vmem>>, vector<1x2x128xf32>,
    return
  }
  func.func @transform_0(%arg0: i32) -> i32 {
    %c0_i32 = arith.constant 0 : i32
    %c0_i32_0 = arith.constant 0 : i32
    return %c0_i32 : i32
  }
  func.func @transform_1(%arg0: i32) -> (i32, i32, i32) {
    %c0_i32 = arith.constant 0 : i32
    %c0_i32_0 = arith.constant 0 : i32
    %c0_i32_1 = arith.constant 0 : i32
    return %arg0, %c0_i32, %c0_i32_0 : i32, i32, i32
  }
  func.func @transform_2(%arg0: i32) -> (i32, i32) {
    %c0_i32 = arith.constant 0 : i32
    %c0_i32_0 = arith.constant 0 : i32
    %c0_i32_1 = arith.constant 0 : i32
    return %c0_i32, %c0_i32_0 : i32, i32
  }
  func.func @transform_3(%arg0: i32) -> (i32, i32) {
    %c0_i32 = arith.constant 0 : i32
    %c0_i32_0 = arith.constant 0 : i32
    %c0_i32_1 = arith.constant 0 : i32
    return %c0_i32, %c0_i32_0 : i32, i32
  }
  func.func @transform_4(%arg0: i32) -> (i32, i32, i32) {
    %c0_i32 = arith.constant 0 : i32
    %c0_i32_0 = arith.constant 0 : i32
    %c0_i32_1 = arith.constant 0 : i32
    return %arg0, %c0_i32, %c0_i32_0 : i32, i32, i32
  }
  func.func @transform_5(%arg0: i32) -> (i32, i32, i32) {
    %c0_i32 = arith.constant 0 : i32
    %c0_i32_0 = arith.constant 0 : i32
    %c0_i32_1 = arith.constant 0 : i32
    return %arg0, %c0_i32, %c0_i32_0 : i32, i32, i32
  }
}

module attributes {stable_mosaic.version = 11 : i64} {
  func.func @_feat_mix_kernel(%arg0: i32, %arg1: memref<2xf32, #tpu.memory_space<smem>>, %arg2: memref<16x16xf32, #tpu.memory_space<vmem>>, %arg3: memref<16x32xf32, #tpu.memory_space<vmem>>, %arg4: memref<1x32xf32, #tpu.memory_space<vmem>>, %arg5: memref<32x16xf32, #tpu.memory_space<vmem>>, %arg6: memref<1x16xf32, #tpu.memory_space<vmem>>, %arg7: memref<16x16xf32, #tpu.memory_space<vmem>>) attributes {dimension_semantics = [#tpu.dimension_semantics<parallel>], iteration_bounds = array<i64: 1>, scalar_prefetch = 0 : i64, scratch_operands = 0 : i64, tpu.core_type = #tpu.core_type<tc>, window_params = [{transform_indices = @transform_0, window_bounds = array<i64: 2>}, {transform_indices = @transform_1, window_bounds = array<i64: 16, 16>}, {pipeline_mode = #tpu.pipeline_mode<synchronous>, transform_indices = @transform_2, window_bounds = array<i64: 16, 32>}, {pipeline_mode = #tpu.pipeline_mode<synchronous>, transform_indices = @transform_3, window_bounds = array<i64: 1, 32>}, {pipeline_mode = #tpu.pipeline_mode<synchronous>, transform_indices = @transform_4, window_bounds = array<i64: 32, 16>}, {pipeline_mode = #tpu.pipeline_mode<synchronous>, transform_indices = @transform_5, window_bounds = array<i64: 1, 16>}, {transform_indices = @transform_6, window_bounds = array<i64: 16, 16>}]} {
    %c0 = arith.constant 0 : index
    %0 = memref.load %arg1[%c0] : memref<2xf32, #tpu.memory_space<smem>>
    %c1 = arith.constant 1 : index
    %1 = memref.load %arg1[%c1] : memref<2xf32, #tpu.memory_space<smem>>
    %c0_0 = arith.constant 0 : index
    %c0_1 = arith.constant 0 : index
    %2 = vector.load %arg2[%c0_0, %c0_1] : memref<16x16xf32, #tpu.memory_space<vmem>>, vector<16x16xf32>
    %3 = vector.broadcast %0 : f32 to vector<16x16xf32>
    %4 = arith.subf %2, %3 : vector<16x16xf32>
    %5 = vector.broadcast %1 : f32 to vector<16x16xf32>
    %6 = arith.mulf %4, %5 : vector<16x16xf32>
    %c0_2 = arith.constant 0 : index
    %c0_3 = arith.constant 0 : index
    %7 = vector.load %arg3[%c0_2, %c0_3] : memref<16x32xf32, #tpu.memory_space<vmem>>, vector<16x32xf32>
    %cst = arith.constant dense<0.000000e+00> : vector<16x32xf32>
    %8 = tpu.matmul %6, %7, %cst {dimension_numbers = #tpu.dot_dimension_numbers<[1], [0], [0], [1], [0, 0, 1, 1], [], []>} : vector<16x16xf32>, vector<16x32xf32>, vector<16x32xf32> -> vector<16x32xf32>
    %c0_4 = arith.constant 0 : index
    %c0_5 = arith.constant 0 : index
    %9 = vector.load %arg4[%c0_4, %c0_5] : memref<1x32xf32, #tpu.memory_space<vmem>>, vector<1x32xf32>
    %10 = vector.broadcast %9 : vector<1x32xf32> to vector<16x32xf32>
    %11 = arith.addf %8, %10 : vector<16x32xf32>
    %cst_6 = arith.constant 0.000000e+00 : f32
    %12 = vector.broadcast %cst_6 : f32 to vector<16x32xf32>
    %13 = arith.maximumf %11, %12 : vector<16x32xf32>
    %c0_7 = arith.constant 0 : index
    %c0_8 = arith.constant 0 : index
    %14 = vector.load %arg5[%c0_7, %c0_8] : memref<32x16xf32, #tpu.memory_space<vmem>>, vector<32x16xf32>
    %cst_9 = arith.constant dense<0.000000e+00> : vector<16x16xf32>
    %15 = tpu.matmul %13, %14, %cst_9 {dimension_numbers = #tpu.dot_dimension_numbers<[1], [0], [0], [1], [0, 0, 1, 1], [], []>} : vector<16x32xf32>, vector<32x16xf32>, vector<16x16xf32> -> vector<16x16xf32>
    %c0_10 = arith.constant 0 : index
    %c0_11 = arith.constant 0 : index
    %16 = vector.load %arg6[%c0_10, %c0_11] : memref<1x16xf32, #tpu.memory_space<vmem>>, vector<1x16xf32>
    %17 = vector.broadcast %16 : vector<1x16xf32> to vector<16x16xf32>
    %18 = arith.addf %15, %17 : vector<16x16xf32>
    %19 = arith.addf %18, %2 : vector<16x16xf32>
    %c0_12 = arith.constant 0 : index
    %c0_13 = arith.constant 0 : index
    %20 = vector.load %arg7[%c0_12, %c0_13] : memref<16x16xf32, #tpu.memory_space<vmem>>, vector<16x16xf32>
    tpu.vector_store %arg7[%c0_12, %c0_13], %19 {strides = array<i32>} : memref<16x16xf32, #tpu.memory_space<vmem>>, vector<16x16xf32>,
    return
  }
  func.func @transform_0(%arg0: i32) -> i32 {
    %c0_i32 = arith.constant 0 : i32
    %c0_i32_0 = arith.constant 0 : i32
    return %c0_i32 : i32
  }
  func.func @transform_1(%arg0: i32) -> (i32, i32) {
    %c0_i32 = arith.constant 0 : i32
    %c0_i32_0 = arith.constant 0 : i32
    return %arg0, %c0_i32 : i32, i32
  }
  func.func @transform_2(%arg0: i32) -> (i32, i32) {
    %c0_i32 = arith.constant 0 : i32
    %c0_i32_0 = arith.constant 0 : i32
    %c0_i32_1 = arith.constant 0 : i32
    return %c0_i32, %c0_i32_0 : i32, i32
  }
  func.func @transform_3(%arg0: i32) -> (i32, i32) {
    %c0_i32 = arith.constant 0 : i32
    %c0_i32_0 = arith.constant 0 : i32
    %c0_i32_1 = arith.constant 0 : i32
    return %c0_i32, %c0_i32_0 : i32, i32
  }
  func.func @transform_4(%arg0: i32) -> (i32, i32) {
    %c0_i32 = arith.constant 0 : i32
    %c0_i32_0 = arith.constant 0 : i32
    %c0_i32_1 = arith.constant 0 : i32
    return %c0_i32, %c0_i32_0 : i32, i32
  }
  func.func @transform_5(%arg0: i32) -> (i32, i32) {
    %c0_i32 = arith.constant 0 : i32
    %c0_i32_0 = arith.constant 0 : i32
    %c0_i32_1 = arith.constant 0 : i32
    return %c0_i32, %c0_i32_0 : i32, i32
  }
  func.func @transform_6(%arg0: i32) -> (i32, i32) {
    %c0_i32 = arith.constant 0 : i32
    %c0_i32_0 = arith.constant 0 : i32
    return %arg0, %c0_i32 : i32, i32
  }
}

</mosaic_0001>

<llo_original>
// kernel: mixer_forward.2
$region0: #{mixer_forward.2}
  #allocation0 [shape = 'u32[]', space=smem, size = 0x4, offset = 0x4, fixed_abs, tag = 'smem constant byte address 0x4 - core index']
  #allocation1 [shape = 'u32[72,128]{1,0:T(1,128)}', space=vmem, size = 0x9000, scoped, tag = 'internal scratch']
  %s0 = inlined_call_operand.vmem [shape: f32[2], index: 0, kind: input, shape index: {}]
  %s1 = inlined_call_operand.vmem [shape: f32[2,8,16], index: 1, kind: input, shape index: {}]
  %s2 = inlined_call_operand.vmem [shape: f32[8,8], index: 2, kind: input, shape index: {}]
  %s3 = inlined_call_operand.vmem [shape: f32[8,1], index: 3, kind: input, shape index: {}]
  %s4 = inlined_call_operand.vmem [shape: f32[2,8,16], index: 4, kind: output, shape index: {0}]
  %s5 = inlined_call_operand.vmem [shape: f32[2,2,128], index: 5, kind: output, shape index: {1}]
  %6 = xla_tuple %s4, %s5
  %s7 = sld [smem:[#allocation0]]
  $region61: #{mixer_forward.2} parent=0
    _
  %s9 = ssub.s32 1, %s7
  %s10 = scalar_select 0, %s9, %s7
  $region1: #{mixer_forward.2} parent=0
    #allocation2 [shape = 'u8[512]{0}', space=smem, size = 0x200, scoped, tag = 'input window, operand 0, single buffered']
    #allocation3 [shape = 's32[2]{0}', space=sflag, size = 0x8, scoped, tag = 'scoped memory for mixer_forward.2']
    %11 = vsyncpa [#allocation3], 0
    loop: start=0, step=1, limit=4
    $region2: #{mixer_forward.2} parent=1 // loop_pre_header
      _
    $region3: #{mixer_forward.2} parent=1 // loop_header
      %s13 = sphi 0, %s17
      %p14 = scmp.ge.s32.totalorder %s13, 4
      %s21 = sphi 0, %s21
      %s23 = sphi 0, %s21
      %s24 = sphi 0, %s23
      %s38 = sphi 0, %s24
      %s44 = sphi 0, %s46
      %s47 = sphi 0, %s44
      %s48 = sphi 0, %s47
      %s64 = sphi 0, %s48
      %s68 = sphi 0, %s68
      %s70 = sphi 0, %s68
      %s71 = sphi 0, %s70
      %s85 = sphi 0, %s71
      %s89 = sphi 0, %s89
      %s91 = sphi 0, %s89
      %s92 = sphi 0, %s91
      %s106 = sphi 0, %s92
      %s112 = sphi 0, %s114
      %s115 = sphi 0, %s112
      %s116 = sphi 0, %s115
      %s132 = sphi 0, %s116
      %s138 = sphi 0, %s140
      %s141 = sphi 0, %s138
      %s142 = sphi 0, %s141
      %s158 = sphi 0, %s142
    $region4: #{mixer_forward.2} parent=1 // loop_header_branch
      %16 = sbr.rel (%p14) target = $region8
    $region5: #{mixer_forward.2} parent=1 // loop_body
      %s18 = ssub.s32 %s13, 1
      %s19 = ssub.s32 %s13, 2
      %s20 = sadd.s32 %s13, 1
      %s22 = sadd.s32 %s21, 1
      %p25 = scmp.eq.s32.totalorder %s13, 1
      %p26 = scmp.ne.s32.totalorder %s21, %s23
      %p27 = scmp.eq.s32.totalorder %s13, 0
      %p28 = por %p26, %p27
      %p29 = scmp.ne.s32.totalorder %s21, %s23
      %p30 = scmp.eq.s32.totalorder %s18, 1
      %p31 = por %p29, %p30
      %p32 = scmp.ne.s32.totalorder %s23, %s24
      %p33 = scmp.eq.s32.totalorder %s18, 0
      %p34 = por %p32, %p33
      %p35 = scmp.ne.s32.totalorder %s23, %s24
      %p36 = scmp.eq.s32.totalorder %s19, 1
      %p37 = por %p35, %p36
      %p39 = scmp.ne.s32.totalorder %s24, %s38
      %p40 = scmp.eq.s32.totalorder %s19, 0
      %p41 = por %p39, %p40
      %s42 = ssub.s32 %s13, %s20
      %p43 = scmp.eq.s32.totalorder %s42, 0
      %s45 = sadd.s32 %s44, 1
      %s46 = scalar_select %p43, %s44, %s45
      %p49 = pneg %p43
      %p50 = scmp.eq.s32.totalorder %s13, 1
      %p51 = por %p49, %p50
      %p52 = scmp.ne.s32.totalorder %s44, %s47
      %p53 = scmp.eq.s32.totalorder %s13, 0
      %p54 = por %p52, %p53
      %p55 = scmp.ne.s32.totalorder %s44, %s47
      %p56 = scmp.eq.s32.totalorder %s18, 1
      %p57 = por %p55, %p56
      %p58 = scmp.ne.s32.totalorder %s47, %s48
      %p59 = scmp.eq.s32.totalorder %s18, 0
      %p60 = por %p58, %p59
      %p61 = scmp.ne.s32.totalorder %s47, %s48
      %p62 = scmp.eq.s32.totalorder %s19, 1
      %p63 = por %p61, %p62
      %p65 = scmp.ne.s32.totalorder %s48, %s64
      %p66 = scmp.eq.s32.totalorder %s19, 0
      %p67 = por %p65, %p66
      %s69 = sadd.s32 %s68, 1
      %p72 = scmp.eq.s32.totalorder %s13, 1
      %p73 = scmp.ne.s32.totalorder %s68, %s70
      %p74 = scmp.eq.s32.totalorder %s13, 0
      %p75 = por %p73, %p74
      %p76 = scmp.ne.s32.totalorder %s68, %s70
      %p77 = scmp.eq.s32.totalorder %s18, 1
      %p78 = por %p76, %p77
      %p79 = scmp.ne.s32.totalorder %s70, %s71
      %p80 = scmp.eq.s32.totalorder %s18, 0
      %p81 = por %p79, %p80
      %p82 = scmp.ne.s32.totalorder %s70, %s71
      %p83 = scmp.eq.s32.totalorder %s19, 1
      %p84 = por %p82, %p83
      %p86 = scmp.ne.s32.totalorder %s71, %s85
      %p87 = scmp.eq.s32.totalorder %s19, 0
      %p88 = por %p86, %p87
      %s90 = sadd.s32 %s89, 1
      %p93 = scmp.eq.s32.totalorder %s13, 1
      %p94 = scmp.ne.s32.totalorder %s89, %s91
      %p95 = scmp.eq.s32.totalorder %s13, 0
      %p96 = por %p94, %p95
      %p97 = scmp.ne.s32.totalorder %s89, %s91
      %p98 = scmp.eq.s32.totalorder %s18, 1
      %p99 = por %p97, %p98
      %p100 = scmp.ne.s32.totalorder %s91, %s92
      %p101 = scmp.eq.s32.totalorder %s18, 0
      %p102 = por %p100, %p101
      %p103 = scmp.ne.s32.totalorder %s91, %s92
      %p104 = scmp.eq.s32.totalorder %s19, 1
      %p105 = por %p103, %p104
      %p107 = scmp.ne.s32.totalorder %s92, %s106
      %p108 = scmp.eq.s32.totalorder %s19, 0
      %p109 = por %p107, %p108
      %s110 = ssub.s32 %s13, %s20
      %p111 = scmp.eq.s32.totalorder %s110, 0
      %s113 = sadd.s32 %s112, 1
      %s114 = scalar_select %p111, %s112, %s113
      %p117 = pneg %p111
      %p118 = scmp.eq.s32.totalorder %s13, 1
      %p119 = por %p117, %p118
      %p120 = scmp.ne.s32.totalorder %s112, %s115
      %p121 = scmp.eq.s32.totalorder %s13, 0
      %p122 = por %p120, %p121
      %p123 = scmp.ne.s32.totalorder %s112, %s115
      %p124 = scmp.eq.s32.totalorder %s18, 1
      %p125 = por %p123, %p124
      %p126 = scmp.ne.s32.totalorder %s115, %s116
      %p127 = scmp.eq.s32.totalorder %s18, 0
      %p128 = por %p126, %p127
      %p129 = scmp.ne.s32.totalorder %s115, %s116
      %p130 = scmp.eq.s32.totalorder %s19, 1
      %p131 = por %p129, %p130
      %p133 = scmp.ne.s32.totalorder %s116, %s132
      %p134 = scmp.eq.s32.totalorder %s19, 0
      %p135 = por %p133, %p134
      %s136 = ssub.s32 %s13, %s20
      %p137 = scmp.eq.s32.totalorder %s136, 0
      %s139 = sadd.s32 %s138, 1
      %s140 = scalar_select %p137, %s138, %s139
      %p143 = pneg %p137
      %p144 = scmp.eq.s32.totalorder %s13, 1
      %p145 = por %p143, %p144
      %p146 = scmp.ne.s32.totalorder %s138, %s141
      %p147 = scmp.eq.s32.totalorder %s13, 0
      %p148 = por %p146, %p147
      %p149 = scmp.ne.s32.totalorder %s138, %s141
      %p150 = scmp.eq.s32.totalorder %s18, 1
      %p151 = por %p149, %p150
      %p152 = scmp.ne.s32.totalorder %s141, %s142
      %p153 = scmp.eq.s32.totalorder %s18, 0
      %p154 = por %p152, %p153
      %p155 = scmp.ne.s32.totalorder %s141, %s142
      %p156 = scmp.eq.s32.totalorder %s19, 1
      %p157 = por %p155, %p156
      %p159 = scmp.ne.s32.totalorder %s142, %s158
      %p160 = scmp.eq.s32.totalorder %s19, 0
      %p161 = por %p159, %p160
      %p162 = scmp.le.s32.totalorder 1, %s13
      %p163 = scmp.lt.s32.totalorder %s13, 3
      %p164 = pnand %p162, %p163
      %p165 = pneg %p164
      // Predicated region
      $region9: #{mixer_forward.2} parent=5 // pred_check
        _
      $region10: #{mixer_forward.2} parent=5 // pred_check_branch
        %167 = sbr.rel (%p164) target = $region12
      $region11: #{mixer_forward.2} parent=5 // pred_region
        %s168 = ssub.s32 %s13, 1
        // Predicated region
        $region13: #{mixer_forward.2} parent=11 // pred_check
          %p169 = pneg %p34
        $region14: #{mixer_forward.2} parent=11 // pred_check_branch
          %171 = sbr.rel (%p169) target = $region16
        $region15: #{mixer_forward.2} parent=11 // pred_region
          %173 = vsyncadd [#allocation3], 0
          %s175 = sshll.u32 %s0, 4
          %s176 = int_to_ptr.vmem [resolvable:$true] %s175
          %178 = dma.vmem_to_smem %s176, 16, [#allocation2], [#allocation3]
        $region16: #{mixer_forward.2} parent=11 // pred_fallthru
          _
        // Predicated region
        $region17: #{mixer_forward.2} parent=11 // pred_check
          %p179 = pneg %p81
        $region18: #{mixer_forward.2} parent=11 // pred_check_branch
          %181 = sbr.rel (%p179) target = $region20
        $region19: #{mixer_forward.2} parent=11 // pred_region
          _
        $region20: #{mixer_forward.2} parent=11 // pred_fallthru
          _
        // Predicated region
        $region21: #{mixer_forward.2} parent=11 // pred_check
          %p182 = pneg %p102
        $region22: #{mixer_forward.2} parent=11 // pred_check_branch
          %184 = sbr.rel (%p182) target = $region24
        $region23: #{mixer_forward.2} parent=11 // pred_region
          _
        $region24: #{mixer_forward.2} parent=11 // pred_fallthru
          _
      $region12: #{mixer_forward.2} parent=5 // pred_fallthru
        _
      %p185 = scmp.lt.s32.totalorder %s13, 2
      // Predicated region
      $region25: #{mixer_forward.2} parent=5 // pred_check
        %p186 = pneg %p185
      $region26: #{mixer_forward.2} parent=5 // pred_check_branch
        %188 = sbr.rel (%p186) target = $region28
      $region27: #{mixer_forward.2} parent=5 // pred_region
        // Predicated region
        $region29: #{mixer_forward.2} parent=27 // pred_check
          %p189 = pneg %p54
        $region30: #{mixer_forward.2} parent=27 // pred_check_branch
          %191 = sbr.rel (%p189) target = $region32
        $region31: #{mixer_forward.2} parent=27 // pred_region
          %p192 = scmp.lt.s32.totalorder %s13, 1
          %s193 = scalar_select %p192, %s13, 1
          %s194 = smul.addr %s193, 8
          %s195 = scalar_lea.vmem %s1, %s194
        $region32: #{mixer_forward.2} parent=27 // pred_fallthru
          _
      $region28: #{mixer_forward.2} parent=5 // pred_fallthru
        _
      %p196 = scmp.le.s32.totalorder 1, %s13
      %p197 = scmp.lt.s32.totalorder %s13, 3
      %p198 = pnand %p196, %p197
      %p199 = pneg %p198
      // Predicated region
      $region33: #{mixer_forward.2} parent=5 // pred_check
        _
      $region34: #{mixer_forward.2} parent=5 // pred_check_branch
        %201 = sbr.rel (%p198) target = $region36
      $region35: #{mixer_forward.2} parent=5 // pred_region
        %s202 = ssub.s32 %s13, 1
        // Predicated region
        $region37: #{mixer_forward.2} parent=35 // pred_check
          %p203 = pneg %p34
        $region38: #{mixer_forward.2} parent=35 // pred_check_branch
          %205 = sbr.rel (%p203) target = $region40
        $region39: #{mixer_forward.2} parent=35 // pred_region
          %207 = dma.done [#allocation3], 16
        $region40: #{mixer_forward.2} parent=35 // pred_fallthru
          _
        %208 = sfence
        %p209 = pneg %p34
        %p210 = pneg %p31
        %p211 = scmp.lt.s32.totalorder %s18, 1
        %s212 = scalar_select %p211, %s18, 1
        %s213 = smul.addr %s212, 8
        %s214 = scalar_lea.vmem %s1, %s213
        %p215 = pneg %p60
        %p216 = pneg %p57
        %p217 = pneg %p81
        %p218 = pneg %p78
        %p219 = pneg %p102
        %p220 = pneg %p99
        %p221 = pneg %p128
        %p222 = pneg %p125
        %p223 = scmp.lt.s32.totalorder %s18, 1
        %s224 = scalar_select %p223, %s18, 1
        %s225 = smul.addr %s224, 8
        %s226 = scalar_lea.vmem %s4, %s225
        %p227 = pneg %p154
        %p228 = pneg %p151
        %p229 = scmp.lt.s32.totalorder %s18, 1
        %s230 = scalar_select %p229, %s18, 1
        %s231 = smul.addr %s230, 2
        %s232 = scalar_lea.vmem %s5, %s231
        %p233 = scmp.lt.s32.totalorder %s18, 1
        %s234 = scalar_select %p233, %s18, 1
        %s235 = smul.addr %s234, 8
        %s236 = scalar_lea.vmem %s1, %s235
        %p237 = scmp.lt.s32.totalorder %s18, 1
        %s238 = scalar_select %p237, %s18, 1
        %s239 = smul.addr %s238, 8
        %s240 = scalar_lea.vmem %s4, %s239
        %p241 = scmp.lt.s32.totalorder %s18, 1
        %s242 = scalar_select %p241, %s18, 1
        %s243 = smul.addr %s242, 2
        %s244 = scalar_lea.vmem %s5, %s243
        %s245 = sld [smem:[#allocation2]]
        %s246 = sld [smem:[#allocation2 + $0x1]]
        %v247 = vld [vmem:[%s236] sm:$0xff]
        %v248 = vstv %s245
        %v249 = vsub.f32 %v247, %v248
        %v250 = vstv %s246
        %v251 = vmul.f32 %v249, %v250
        %v252 = vld [vmem:[%s2] sm:$0xff]
        %v253 = vld [vmem:[%s3] sm:$0xff]
        %255 = vset.pattern.permute.xlu0 0
        %256 = vperm.xlu0 %255, %v253
        %v257 = vpop.permute.xlu0 %256
        %vm259 = vcmask 64512
        %v261 = vsel %vm259, %v252, 0
        %263 = vmatpush.msra.mxu0 0.0
        %264 = vmatpush.msra.mxu0 0.0
        %265 = vmatpush.msra.mxu0 0.0
        %266 = vmatpush.msra.mxu0 0.0
        %267 = vmatpush.msra.mxu0 0.0
        %268 = vmatpush.msra.mxu0 0.0
        %269 = vmatpush.msra.mxu0 0.0
        %270 = vmatpush.msra.mxu0 0.0
        %271 = vmatpush.msra.mxu0 0.0
        %272 = vmatpush.msra.mxu0 0.0
        %273 = vmatpush.msra.mxu0 0.0
        %274 = vmatpush.msra.mxu0 0.0
        %275 = vmatpush.msra.mxu0 0.0
        %276 = vmatpush.msra.mxu0 0.0
        %277 = vmatpush.msra.mxu0 0.0
        %278 = vmatpush.msra.mxu0 %v251
        %279 = vmatmul.f32.gmra.mxu0 %v261
        %v280 = vpop.f32.mrf.mxu0
        %v281 = vadd.f32 %v257, %v280
        %282 = vdwg.mxu0
        %v283 = vmax.f32 %v281, 0.0
        %v284 = vadd.f32 %v283, %v247
        %vm285 = vcmask 130048
        %286 = vst.msk [vmem:[%s240] sm:$0xff] %vm285, %v284
        %v287 = vsub.f32 %v284, %v248
        %v288 = vlaneseq
        %v289 = vshrl.u32 %v288, 7
        %vm290 = vcmp.eq.s32.totalorder %v289, 0
        %v291 = vsel %vm285, %v287, 0.0
        %292 = vadd.xlane.f32.xlu0 %v291
        %v293 = vpop.xlane.xlu0 %292
        %v294 = vrot.slane %v293, 4
        %v295 = vadd.f32 %v293, %v294
        %v296 = vrot.slane %v295, 2
        %v297 = vadd.f32 %v295, %v296
        %v298 = vrot.slane %v297, 1
        %v299 = vadd.f32 %v297, %v298
        %s300 = vtos %v299
        %v301 = vmul.f32 %v287, %v287
        %v302 = vsel %vm285, %v301, 0.0
        %303 = vadd.xlane.f32.xlu0 %v302
        %v304 = vpop.xlane.xlu0 %303
        %v305 = vrot.slane %v304, 4
        %v306 = vadd.f32 %v304, %v305
        %v307 = vrot.slane %v306, 2
        %v308 = vadd.f32 %v306, %v307
        %v309 = vrot.slane %v308, 1
        %v310 = vadd.f32 %v308, %v309
        %s311 = vtos %v310
        %v312 = vstv %s300
        %v313 = vstv %s311
        %v314 = vsel %vm290, %v312, %v313
        %315 = vst [vmem:[%s244] sm:$0x3] %v314
        %p316 = scmp.lt.s32.totalorder %s18, 1
        %s317 = scalar_select %p316, %s18, 1
        %s318 = smul.addr %s317, 8
        %s319 = scalar_lea.vmem %s4, %s318
        %p320 = scmp.lt.s32.totalorder %s18, 1
        %s321 = scalar_select %p320, %s18, 1
        %s322 = smul.addr %s321, 2
        %s323 = scalar_lea.vmem %s5, %s322
        // Predicated region
        $region41: #{mixer_forward.2} parent=35 // pred_check
          %p324 = pneg %p125
        $region42: #{mixer_forward.2} parent=35 // pred_check_branch
          %326 = sbr.rel (%p324) target = $region44
        $region43: #{mixer_forward.2} parent=35 // pred_region
          _
        $region44: #{mixer_forward.2} parent=35 // pred_fallthru
          _
        // Predicated region
        $region45: #{mixer_forward.2} parent=35 // pred_check
          %p327 = pneg %p151
        $region46: #{mixer_forward.2} parent=35 // pred_check_branch
          %329 = sbr.rel (%p327) target = $region48
        $region47: #{mixer_forward.2} parent=35 // pred_region
          _
        $region48: #{mixer_forward.2} parent=35 // pred_fallthru
          _
      $region36: #{mixer_forward.2} parent=5 // pred_fallthru
        _
      %p330 = scmp.le.s32.totalorder 2, %s13
      // Predicated region
      $region49: #{mixer_forward.2} parent=5 // pred_check
        %p331 = pneg %p330
      $region50: #{mixer_forward.2} parent=5 // pred_check_branch
        %333 = sbr.rel (%p331) target = $region52
      $region51: #{mixer_forward.2} parent=5 // pred_region
        %s334 = ssub.s32 %s13, 2
        // Predicated region
        $region53: #{mixer_forward.2} parent=51 // pred_check
          %p335 = pneg %p131
        $region54: #{mixer_forward.2} parent=51 // pred_check_branch
          %337 = sbr.rel (%p335) target = $region56
        $region55: #{mixer_forward.2} parent=51 // pred_region
          %p338 = scmp.lt.s32.totalorder %s19, 1
          %s339 = scalar_select %p338, %s19, 1
          %s340 = smul.addr %s339, 8
          %s341 = scalar_lea.vmem %s4, %s340
        $region56: #{mixer_forward.2} parent=51 // pred_fallthru
          _
        // Predicated region
        $region57: #{mixer_forward.2} parent=51 // pred_check
          %p342 = pneg %p157
        $region58: #{mixer_forward.2} parent=51 // pred_check_branch
          %344 = sbr.rel (%p342) target = $region60
        $region59: #{mixer_forward.2} parent=51 // pred_region
          %p345 = scmp.lt.s32.totalorder %s19, 1
          %s346 = scalar_select %p345, %s19, 1
          %s347 = smul.addr %s346, 2
          %s348 = scalar_lea.vmem %s5, %s347
        $region60: #{mixer_forward.2} parent=51 // pred_fallthru
          _
      $region52: #{mixer_forward.2} parent=5 // pred_fallthru
        _
    $region6: #{mixer_forward.2} parent=1 // loop_footer
      %s17 = sadd.s32 1, %s13
    $region7: #{mixer_forward.2} parent=1 // loop_footer_branch
      %12 = sbr.rel target = $region3
    $region8: #{mixer_forward.2} parent=1 // loop_exit
      _
    %349 = vsyncpa [#allocation3], 1
    %s350 = scalar_lea.sflag [#allocation3], 1
    %351 = vsyncpa %s350, 1

// kernel: mixer_forward.3
$region0: #{mixer_forward.3}
  #allocation0 [shape = 'u32[]', space=smem, size = 0x4, offset = 0x4, fixed_abs, tag = 'smem constant byte address 0x4 - core index']
  #allocation1 [shape = 'u32[72,128]{1,0:T(1,128)}', space=vmem, size = 0x9000, scoped, tag = 'internal scratch']
  %s0 = inlined_call_operand.vmem [shape: f32[2], index: 0, kind: input, shape index: {}]
  %s1 = inlined_call_operand.vmem [shape: f32[16,16], index: 1, kind: input, shape index: {}]
  %s2 = inlined_call_operand.vmem [shape: f32[16,32], index: 2, kind: input, shape index: {}]
  %s3 = inlined_call_operand.vmem [shape: f32[1,32], index: 3, kind: input, shape index: {}]
  %s4 = inlined_call_operand.vmem [shape: f32[32,16], index: 4, kind: input, shape index: {}]
  %s5 = inlined_call_operand.vmem [shape: f32[1,16], index: 5, kind: input, shape index: {}]
  %s6 = inlined_call_operand.hbm [shape: f32[16,16], index: 6, kind: output, shape index: {}]
  %s7 = sld [smem:[#allocation0]]
  $region38: #{mixer_forward.3} parent=0
    _
  %s9 = ssub.s32 1, %s7
  %s10 = scalar_select 0, %s9, %s7
  $region1: #{mixer_forward.3} parent=0
    #allocation2 [shape = 'u8[512]{0}', space=smem, size = 0x200, scoped, tag = 'input window, operand 0, single buffered']
    #allocation3 [shape = 's32[1]{0}', space=sflag, size = 0x4, scoped, tag = 'scoped memory for mixer_forward.3']
    #allocation4 [shape = 's32[1]{0}', space=sflag, size = 0x4, scoped, tag = 'scoped memory for mixer_forward.3']
    #allocation5 [shape = 'u8[8192]{0}', space=vmem, size = 0x2000, scoped, tag = 'output window, operand 0, single buffered']
    %11 = vsyncpa [#allocation4], 0
    %12 = vsyncpa [#allocation3], 0
    // Predicated region
    $region2: #{mixer_forward.3} parent=1 // pred_check
      _
    $region3: #{mixer_forward.3} parent=1 // pred_check_branch
      %14 = sbr.rel (0) target = $region5
    $region4: #{mixer_forward.3} parent=1 // pred_region
      %16 = vsyncadd [#allocation4], 0
      %s18 = sshll.u32 %s0, 4
      %s19 = int_to_ptr.vmem [resolvable:$true] %s18
      %21 = dma.vmem_to_smem %s19, 16, [#allocation2], [#allocation4]
    $region5: #{mixer_forward.3} parent=1 // pred_fallthru
      _
    // Predicated region
    $region6: #{mixer_forward.3} parent=1 // pred_check
      _
    $region7: #{mixer_forward.3} parent=1 // pred_check_branch
      %23 = sbr.rel (0) target = $region9
    $region8: #{mixer_forward.3} parent=1 // pred_region
      _
    $region9: #{mixer_forward.3} parent=1 // pred_fallthru
      _
    // Predicated region
    $region10: #{mixer_forward.3} parent=1 // pred_check
      _
    $region11: #{mixer_forward.3} parent=1 // pred_check_branch
      %25 = sbr.rel (0) target = $region13
    $region12: #{mixer_forward.3} parent=1 // pred_region
      _
    $region13: #{mixer_forward.3} parent=1 // pred_fallthru
      _
    // Predicated region
    $region14: #{mixer_forward.3} parent=1 // pred_check
      _
    $region15: #{mixer_forward.3} parent=1 // pred_check_branch
      %27 = sbr.rel (0) target = $region17
    $region16: #{mixer_forward.3} parent=1 // pred_region
      _
    $region17: #{mixer_forward.3} parent=1 // pred_fallthru
      _
    // Predicated region
    $region18: #{mixer_forward.3} parent=1 // pred_check
      _
    $region19: #{mixer_forward.3} parent=1 // pred_check_branch
      %29 = sbr.rel (0) target = $region21
    $region20: #{mixer_forward.3} parent=1 // pred_region
      _
    $region21: #{mixer_forward.3} parent=1 // pred_fallthru
      _
    // Predicated region
    $region22: #{mixer_forward.3} parent=1 // pred_check
      _
    $region23: #{mixer_forward.3} parent=1 // pred_check_branch
      %31 = sbr.rel (0) target = $region25
    $region24: #{mixer_forward.3} parent=1 // pred_region
      _
    $region25: #{mixer_forward.3} parent=1 // pred_fallthru
      _
    // Predicated region
    $region26: #{mixer_forward.3} parent=1 // pred_check
      _
    $region27: #{mixer_forward.3} parent=1 // pred_check_branch
      %33 = sbr.rel (0) target = $region29
    $region28: #{mixer_forward.3} parent=1 // pred_region
      %35 = dma.done [#allocation4], 16
    $region29: #{mixer_forward.3} parent=1 // pred_fallthru
      _
    %36 = sfence
    %s37 = sld [smem:[#allocation2]]
    %s38 = sld [smem:[#allocation2 + $0x1]]
    %v39 = vld [vmem:[%s1] sm:$0xff]
    %v40 = vld [vmem:[%s1 + $0x8] sm:$0xff]
    %v41 = vstv %s37
    %v42 = vsub.f32 %v39, %v41
    %v43 = vsub.f32 %v40, %v41
    %v44 = vstv %s38
    %v45 = vmul.f32 %v42, %v44
    %v46 = vmul.f32 %v43, %v44
    %v47 = vld [vmem:[%s2] sm:$0xff]
    %v48 = vld [vmem:[%s2 + $0x8] sm:$0xff]
    %v49 = vld [vmem:[%s3] sm:$0x1]
    %v51 = vperm.slane %v49, 0
    %vm53 = vcmask 130048
    %v55 = vsel %vm53, %v45, 0
    %v58 = vsel %vm53, %v46, 0
    %60 = vmatpush.msra.mxu0 0.0
    %61 = vmatpush.msra.mxu0 0.0
    %62 = vmatpush.msra.mxu0 0.0
    %63 = vmatpush.msra.mxu0 0.0
    %64 = vmatpush.msra.mxu0 0.0
    %65 = vmatpush.msra.mxu0 0.0
    %66 = vmatpush.msra.mxu0 0.0
    %67 = vmatpush.msra.mxu0 0.0
    %68 = vmatpush.msra.mxu0 0.0
    %69 = vmatpush.msra.mxu0 0.0
    %70 = vmatpush.msra.mxu0 0.0
    %71 = vmatpush.msra.mxu0 0.0
    %72 = vmatpush.msra.mxu0 0.0
    %73 = vmatpush.msra.mxu0 0.0
    %74 = vmatpush.msra.mxu0 %v48
    %75 = vmatpush.msra.mxu0 %v47
    %76 = vmatmul.f32.gmra.mxu0 %v55
    %v77 = vpop.f32.mrf.mxu0
    %v78 = vadd.f32 %v51, %v77
    %79 = vmatmul.f32.gmra.mxu0 %v58
    %v80 = vpop.f32.mrf.mxu0
    %v81 = vadd.f32 %v51, %v80
    %82 = vdwg.mxu0
    %v83 = vmax.f32 %v78, 0.0
    %v84 = vmax.f32 %v81, 0.0
    %v85 = vld [vmem:[%s4] sm:$0xff]
    %v86 = vld [vmem:[%s4 + $0x8] sm:$0xff]
    %v87 = vld [vmem:[%s4 + $0x10] sm:$0xff]
    %v88 = vld [vmem:[%s4 + $0x18] sm:$0xff]
    %v89 = vld [vmem:[%s5] sm:$0x1]
    %v91 = vperm.slane %v89, 0
    %vm93 = vcmask 261120
    %v95 = vsel %vm93, %v83, 0
    %v98 = vsel %vm93, %v84, 0
    %100 = vmatpush.msra.mxu0 0.0
    %101 = vmatpush.msra.mxu0 0.0
    %102 = vmatpush.msra.mxu0 0.0
    %103 = vmatpush.msra.mxu0 0.0
    %104 = vmatpush.msra.mxu0 0.0
    %105 = vmatpush.msra.mxu0 0.0
    %106 = vmatpush.msra.mxu0 0.0
    %107 = vmatpush.msra.mxu0 0.0
    %108 = vmatpush.msra.mxu0 0.0
    %109 = vmatpush.msra.mxu0 0.0
    %110 = vmatpush.msra.mxu0 0.0
    %111 = vmatpush.msra.mxu0 0.0
    %112 = vmatpush.msra.mxu0 %v88
    %113 = vmatpush.msra.mxu0 %v87
    %114 = vmatpush.msra.mxu0 %v86
    %115 = vmatpush.msra.mxu0 %v85
    %116 = vmatmul.f32.gmra.mxu0 %v95
    %v117 = vpop.f32.mrf.mxu0
    %v118 = vadd.f32 %v91, %v117
    %119 = vmatmul.f32.gmra.mxu0 %v98
    %v120 = vpop.f32.mrf.mxu0
    %v121 = vadd.f32 %v91, %v120
    %122 = vdwg.mxu0
    %v123 = vadd.f32 %v118, %v39
    %v124 = vadd.f32 %v121, %v40
    %125 = vst.msk [vmem:[#allocation5] sm:$0xff] %vm53, %v123
    %126 = vst.msk [vmem:[#allocation5 + $0x8] sm:$0xff] %vm53, %v124
    // Predicated region
    $region30: #{mixer_forward.3} parent=1 // pred_check
      _
    $region31: #{mixer_forward.3} parent=1 // pred_check_branch
      %128 = sbr.rel (0) target = $region33
    $region32: #{mixer_forward.3} parent=1 // pred_region
      %130 = vsyncadd [#allocation3], 0
      %s131 = sshll.u32 [#allocation5], 4
      %s132 = int_to_ptr.vmem [resolvable:$true] %s131
      %s133 = sshll.u32 %s6, 4
      %s134 = int_to_ptr.hbm [resolvable:$true] %s133
      %139 = dma.vmem_to_hbm [thread:$0]  %s132, 256, %s134, [#allocation3], 128, 128, 8
    $region33: #{mixer_forward.3} parent=1 // pred_fallthru
      _
    // Predicated region
    $region34: #{mixer_forward.3} parent=1 // pred_check
      _
    $region35: #{mixer_forward.3} parent=1 // pred_check_branch
      %141 = sbr.rel (0) target = $region37
    $region36: #{mixer_forward.3} parent=1 // pred_region
      %143 = dma.done [#allocation3], 256
    $region37: #{mixer_forward.3} parent=1 // pred_fallthru
      _
    %144 = vsyncpa [#allocation3], 1
    %145 = vsyncpa [#allocation4], 1

</llo_original>
